<compile_context>
chip_gen: v5e
topology: v5e:2x2
jax: 0.10.0
libtpu: 0.0.40
codegen_flags: <defaults>
</compile_context>

<pallas_src>
import functools

import jax
import jax.numpy as jnp
from jax import lax
from jax.experimental import pallas as pl
from jax.experimental.pallas import tpu as pltpu


_ROWS = 8                       # sublane-dense row count for the canonical layout (f32)
_SINGLE_BLOCK_BYTES = 8 << 20   # inputs up to ~8 MiB run as a single block (no grid loop)


def _device_budget():
    """Generation-aware (block working-set budget, vmem limit, #TensorCores)."""
    kind = ""
    try:
        kind = jax.devices()[0].device_kind.lower()
    except Exception:
        pass
    if "v7" in kind:
        # v7x: 64 MiB physical VMEM per TensorCore, 2 TensorCores per chip.
        return 20 << 20, 28 << 20, 2
    if "v5" in kind or "v6" in kind:
        # v5e / v6e: 128 MiB VMEM, single TensorCore -> go big.
        return 64 << 20, 96 << 20, 1
    # Unknown generation: stay under every chip's physical / scoped VMEM.
    return 16 << 20, 28 << 20, 1


def _vfl_elementwise(x, z, lb, *, alpha, gamma, approx_sigmoid, binary_label):
    """Per-element BCEWithLogits(x, z) * varifocal_weight, all f32 (~3 EUP ops/elem)."""
    e = jnp.exp(-jnp.abs(x))                        # shared by sigmoid and log1p term
    denom = 1.0 + e
    if approx_sigmoid:
        r = pl.reciprocal(denom, approx=True)       # single EUP op (approx)
        sig = jnp.where(x >= 0.0, r, e * r)
    else:
        sig = jnp.where(x >= 0.0, 1.0, e) / denom   # exact sigmoid(x)
    g = float(gamma)
    if g == 2.0:
        sig_pow = sig * sig                         # VPU multiply instead of pow
    elif g.is_integer() and g > 0:
        sig_pow = lax.integer_pow(sig, int(g))
    else:
        sig_pow = sig ** g                          # fallback: exp(g*log(sig))
    if binary_label:
        # Only valid for strictly 0/1 labels; saves a few VPU ops per element.
        weight = jnp.where(lb != 0.0, z, alpha * sig_pow)
    else:
        weight = alpha * sig_pow * (1.0 - lb) + z * lb
    # Numerically-stable BCE-with-logits: max(x,0) - x*z + log(1 + exp(-|x|))
    bce = jnp.maximum(x, 0.0) - x * z + jnp.log1p(e)
    return bce * weight


def _vfl_kernel_single(pred_ref, gt_ref, label_ref, out_ref, *, alpha, gamma, n,
                       approx_sigmoid, binary_label):
    """Whole problem in one block: no scratch, no init/finalize branches."""
    x = pred_ref[...].astype(jnp.float32)
    z = gt_ref[...].astype(jnp.float32)
    lb = label_ref[...].astype(jnp.float32)
    v = _vfl_elementwise(x, z, lb, alpha=alpha, gamma=gamma,
                         approx_sigmoid=approx_sigmoid, binary_label=binary_label)
    out_ref[0, 0] = jnp.sum(v) / jnp.float32(n)


def _vfl_kernel_tiled(pred_ref, gt_ref, label_ref, out_ref, acc_ref, *, alpha, gamma, n,
                      approx_sigmoid, binary_label):
    """Tiled path: tiny (rows,1) f32 accumulator, per-step cross-lane reduce (XLU)."""
    i = pl.program_id(1)  # inner (reduction) axis

    @pl.when(i == 0)
    def _():
        acc_ref[...] = jnp.zeros_like(acc_ref)

    x = pred_ref[...].astype(jnp.float32)
    z = gt_ref[...].astype(jnp.float32)
    lb = label_ref[...].astype(jnp.float32)
    v = _vfl_elementwise(x, z, lb, alpha=alpha, gamma=gamma,
                         approx_sigmoid=approx_sigmoid, binary_label=binary_label)
    # Cross-lane reduce per step (XLU slot, otherwise idle) keeps accumulator traffic tiny.
    acc_ref[...] += jnp.sum(v, axis=-1, keepdims=True)

    @pl.when(i == pl.num_programs(1) - 1)
    def _():
        out_ref[0, 0] = jnp.sum(acc_ref[...]) / jnp.float32(n)


def _pick_tile(n_lanes, rows, bytes_per_elem, budget_bytes, want_even_tiles):
    """Largest tile_n (multiple of 128, divisor of n_lanes) whose double-buffered
    working set (3 inputs x 2 buffers) fits the budget; optionally force an even
    tile count so both v7x TensorCores get work."""
    cap = budget_bytes // (2 * rows * bytes_per_elem)
    cap = min(cap, n_lanes)
    cap = (cap // 128) * 128
    t = cap
    while t >= 128:
        if n_lanes % t == 0 and (not want_even_tiles or (n_lanes // t) % 2 == 0):
            return t
        t -= 128
    return None


def varifocal_loss(pred_score, gt_score, label, alpha=0.75, gamma=2.0, *,
                   tile_n=None, force_tiled=False, approx_sigmoid=False,
                   binary_label=False, narrow_inputs=False):
    """pred_score, gt_score, label: (B, N) arrays.  Returns scalar float32 loss.

    Inputs may be float32, bfloat16, or (for `label`) int8/bool; math is always f32.
    """
    B, N = pred_score.shape
    assert gt_score.shape == (B, N) and label.shape == (B, N)
    alpha = float(alpha)
    gamma = float(gamma)
    n_mean = N  # loss == total_sum / N

    if narrow_inputs:
        # Opt-in: cut HBM traffic ~2x (kernel math stays f32).  Slightly changes numerics.
        pred_score = pred_score.astype(jnp.bfloat16)
        gt_score = gt_score.astype(jnp.bfloat16)
        label = label.astype(jnp.bfloat16)

    # Canonical sublane/lane-dense layout: the loss only needs sum(all)/N, so any
    # element-preserving reshape is valid.  (8, total//8) keeps sublanes full and
    # gives a long lane axis to tile.  Contiguous row-major reshape: no data movement.
    total = B * N
    if total % (_ROWS * 128) == 0:
        Br, Nr = _ROWS, total // _ROWS
        if (Br, Nr) != (B, N):
            pred_score = pred_score.reshape(Br, Nr)
            gt_score = gt_score.reshape(Br, Nr)
            label = label.reshape(Br, Nr)
    else:
        Br, Nr = B, N

    budget_ws, vmem_limit, num_tc = _device_budget()
    bpe = sum(a.dtype.itemsize for a in (pred_score, gt_score, label))
    cost = pl.CostEstimate(flops=15 * total, transcendentals=3 * total,
                           bytes_accessed=total * bpe + 4)
    kernel_kwargs = dict(alpha=alpha, gamma=gamma, n=n_mean,
                         approx_sigmoid=approx_sigmoid, binary_label=binary_label)

    can_tile = (Nr % 128 == 0)

    # ---- Small/medium fast path: one block, no grid loop, no accumulator. ----
    if not force_tiled and (total * bpe <= _SINGLE_BLOCK_BYTES or not can_tile):
        # TODO(synk): very large inputs whose lane axis is not a multiple of 128 fall
        # through here and may exceed VMEM; pad in the caller (label=1, gt=0 so padded
        # elements contribute exactly 0) if that case matters.
        kernel = functools.partial(_vfl_kernel_single, **kernel_kwargs)
        full_spec = pl.BlockSpec((Br, Nr), lambda i: (0, 0))
        out = pl.pallas_call(
            kernel,
            out_shape=jax.ShapeDtypeStruct((1, 1), jnp.float32),
            grid=(1,),
            in_specs=[full_spec, full_spec, full_spec],
            out_specs=pl.BlockSpec((1, 1), lambda i: (0, 0),
                                   memory_space=pltpu.MemorySpace.SMEM),
            compiler_params=pltpu.CompilerParams(
                dimension_semantics=("arbitrary",),
                vmem_limit_bytes=vmem_limit),
            cost_estimate=cost,
        )(pred_score, gt_score, label)
        return out[0, 0]

    if not can_tile:
        raise ValueError(f"tiled path needs the lane axis ({Nr}) to be a multiple of 128")

    # ---- Tiled path: VMEM-budget-derived tile size. ----
    if tile_n is None:
        picked = None
        if num_tc >= 2:  # prefer an even tile count so both TensorCores get work
            picked = _pick_tile(Nr, Br, bpe, budget_ws, want_even_tiles=True)
        if picked is None:
            picked = _pick_tile(Nr, Br, bpe, budget_ws, want_even_tiles=False)
        if picked is None:
            raise ValueError("could not find a VMEM-fitting tile size for this shape")
        tile_n = picked
    else:
        assert tile_n % 128 == 0 and Nr % tile_n == 0, (Nr, tile_n)

    n_tiles = Nr // tile_n
    n_outer = 2 if (num_tc >= 2 and n_tiles >= 2 and n_tiles % 2 == 0) else 1
    n_inner = n_tiles // n_outer

    if n_outer == 2:
        core_par = getattr(pltpu, "CORE_PARALLEL", None)
        dims = ((core_par, pltpu.ARBITRARY) if core_par is not None
                else ("parallel", "arbitrary"))
    else:
        dims = ("arbitrary", "arbitrary")

    kernel = functools.partial(_vfl_kernel_tiled, **kernel_kwargs)
    in_spec = pl.BlockSpec((Br, tile_n), lambda o, i: (0, o * n_inner + i))

    out = pl.pallas_call(
        kernel,
        out_shape=jax.ShapeDtypeStruct((n_outer, 1), jnp.float32),
        grid_spec=pltpu.PrefetchScalarGridSpec(
            num_scalar_prefetch=0,
            grid=(n_outer, n_inner),
            in_specs=[in_spec, in_spec, in_spec],
            out_specs=pl.BlockSpec((1, 1), lambda o, i: (o, 0),
                                   memory_space=pltpu.MemorySpace.SMEM),
            scratch_shapes=[pltpu.VMEM((Br, 1), jnp.float32)],
        ),
        compiler_params=pltpu.CompilerParams(
            dimension_semantics=dims,
            vmem_limit_bytes=vmem_limit),
        cost_estimate=cost,
    )(pred_score, gt_score, label)
    return jnp.sum(out)


def _reference(pred_score, gt_score, label, alpha=0.75, gamma=2.0):
    """Pure-JAX reference matching the PyTorch module."""
    x = pred_score.astype(jnp.float32)
    z = gt_score.astype(jnp.float32)
    lb = label.astype(jnp.float32)
    weight = alpha * (jax.nn.sigmoid(x) ** gamma) * (1.0 - lb) + z * lb
    bce = -(z * jax.nn.log_sigmoid(x) + (1.0 - z) * jax.nn.log_sigmoid(-x))
    return (bce * weight).mean(1).sum()


if __name__ == "__main__":
    # Small, deterministic inputs: batch of 8 "anchor-rows", 256 scores each.
    key = jax.random.PRNGKey(0)
    k1, k2, k3 = jax.random.split(key, 3)
    B, N = 8, 256
    pred_score = jax.random.normal(k1, (B, N), dtype=jnp.float32) * 2.0
    gt_score = jax.random.uniform(k2, (B, N), dtype=jnp.float32)
    label = (jax.random.uniform(k3, (B, N)) > 0.5).astype(jnp.float32)

    loss = jax.block_until_ready(varifocal_loss(pred_score, gt_score, label))
    ref = _reference(pred_score, gt_score, label)
    assert jnp.allclose(loss, ref, rtol=1e-5, atol=1e-5), (loss, ref)

    # Small batch (B < 8): exercises the sublane/lane-dense canonical relayout.
    k4, k5, k6 = jax.random.split(jax.random.PRNGKey(1), 3)
    B1, N1 = 2, 2048
    p1 = jax.random.normal(k4, (B1, N1), dtype=jnp.float32) * 2.0
    g1 = jax.random.uniform(k5, (B1, N1), dtype=jnp.float32)
    l1 = (jax.random.uniform(k6, (B1, N1)) > 0.5).astype(jnp.float32)
    loss1 = jax.block_until_ready(varifocal_loss(p1, g1, l1))
    ref1 = _reference(p1, g1, l1)
    assert jnp.allclose(loss1, ref1, rtol=1e-4, atol=1e-5), (loss1, ref1)

    # Larger case with an explicit tile: exercises the tiled accumulator path.
    k7, k8, k9 = jax.random.split(jax.random.PRNGKey(2), 3)
    B2, N2 = 8, 4096
    p2 = jax.random.normal(k7, (B2, N2), dtype=jnp.float32) * 2.0
    g2 = jax.random.uniform(k8, (B2, N2), dtype=jnp.float32)
    l2 = (jax.random.uniform(k9, (B2, N2)) > 0.5).astype(jnp.float32)
    loss2 = jax.block_until_ready(
        varifocal_loss(p2, g2, l2, tile_n=1024, force_tiled=True))
    ref2 = _reference(p2, g2, l2)
    assert jnp.allclose(loss2, ref2, rtol=1e-4, atol=1e-5), (loss2, ref2)

    # Same data through the VMEM-budget-derived automatic tile selection.
    loss3 = jax.block_until_ready(varifocal_loss(p2, g2, l2, force_tiled=True))
    assert jnp.allclose(loss3, ref2, rtol=1e-4, atol=1e-5), (loss3, ref2)

    print("KERNEL_OK")
</pallas_src>

<mosaic_0001>
module attributes {stable_mosaic.version = 11 : i64} {
  func.func @_vfl_kernel_single(%arg0: i32, %arg1: memref<8x256xf32, #tpu.memory_space<vmem>>, %arg2: memref<8x256xf32, #tpu.memory_space<vmem>>, %arg3: memref<8x256xf32, #tpu.memory_space<vmem>>, %arg4: memref<1x1xf32, #tpu.memory_space<smem>>) attributes {dimension_semantics = [#tpu.dimension_semantics<arbitrary>], iteration_bounds = array<i64: 1>, scalar_prefetch = 0 : i64, scratch_operands = 0 : i64, tpu.core_type = #tpu.core_type<tc>, window_params = [{pipeline_mode = #tpu.pipeline_mode<synchronous>, transform_indices = @transform_0, window_bounds = array<i64: 8, 256>}, {pipeline_mode = #tpu.pipeline_mode<synchronous>, transform_indices = @transform_1, window_bounds = array<i64: 8, 256>}, {pipeline_mode = #tpu.pipeline_mode<synchronous>, transform_indices = @transform_2, window_bounds = array<i64: 8, 256>}, {transform_indices = @transform_3, window_bounds = array<i64: 1, 1>}]} {
    %c0 = arith.constant 0 : index
    %c0_0 = arith.constant 0 : index
    %0 = vector.load %arg1[%c0, %c0_0] : memref<8x256xf32, #tpu.memory_space<vmem>>, vector<8x256xf32>
    %c0_1 = arith.constant 0 : index
    %c0_2 = arith.constant 0 : index
    %1 = vector.load %arg2[%c0_1, %c0_2] : memref<8x256xf32, #tpu.memory_space<vmem>>, vector<8x256xf32>
    %c0_3 = arith.constant 0 : index
    %c0_4 = arith.constant 0 : index
    %2 = vector.load %arg3[%c0_3, %c0_4] : memref<8x256xf32, #tpu.memory_space<vmem>>, vector<8x256xf32>
    %3 = math.absf %0 : vector<8x256xf32>
    %cst = arith.constant 0.000000e+00 : f32
    %4 = vector.broadcast %cst : f32 to vector<8x256xf32>
    %5 = arith.subf %4, %3 : vector<8x256xf32>
    %6 = math.exp %5 : vector<8x256xf32>
    %cst_5 = arith.constant 1.000000e+00 : f32
    %7 = vector.broadcast %cst_5 : f32 to vector<8x256xf32>
    %8 = arith.addf %7, %6 : vector<8x256xf32>
    %cst_6 = arith.constant 0.000000e+00 : f32
    %9 = vector.broadcast %cst_6 : f32 to vector<8x256xf32>
    %10 = arith.cmpf oge, %0, %9 : vector<8x256xf32>
    %cst_7 = arith.constant 1.000000e+00 : f32
    %11 = vector.broadcast %cst_7 : f32 to vector<8x256xf32>
    %12 = arith.select %10, %11, %6 : vector<8x256xi1>, vector<8x256xf32>
    %13 = arith.divf %12, %8 : vector<8x256xf32>
    %14 = arith.mulf %13, %13 : vector<8x256xf32>
    %cst_8 = arith.constant 7.500000e-01 : f32
    %15 = vector.broadcast %cst_8 : f32 to vector<8x256xf32>
    %16 = arith.mulf %15, %14 : vector<8x256xf32>
    %cst_9 = arith.constant 1.000000e+00 : f32
    %17 = vector.broadcast %cst_9 : f32 to vector<8x256xf32>
    %18 = arith.subf %17, %2 : vector<8x256xf32>
    %19 = arith.mulf %16, %18 : vector<8x256xf32>
    %20 = arith.mulf %1, %2 : vector<8x256xf32>
    %21 = arith.addf %19, %20 : vector<8x256xf32>
    %cst_10 = arith.constant 0.000000e+00 : f32
    %22 = vector.broadcast %cst_10 : f32 to vector<8x256xf32>
    %23 = arith.maximumf %0, %22 : vector<8x256xf32>
    %24 = arith.mulf %0, %1 : vector<8x256xf32>
    %25 = arith.subf %23, %24 : vector<8x256xf32>
    %26 = math.log1p %6 : vector<8x256xf32>
    %27 = arith.addf %25, %26 : vector<8x256xf32>
    %28 = arith.mulf %27, %21 : vector<8x256xf32>
    %29 = vector.shape_cast %28 : vector<8x256xf32> to vector<1x8x256xf32>
    %cst_11 = arith.constant dense<0.000000e+00> : vector<1xf32>
    %30 = vector.multi_reduction <add>, %29, %cst_11 [1, 2] : vector<1x8x256xf32> to vector<1xf32>
    %31 = vector.shape_cast %30 : vector<1xf32> to vector<1x1x1xf32>
    %32 = vector.extract %31[0, 0, 0] : f32 from vector<1x1x1xf32>
    %cst_12 = arith.constant 2.560000e+02 : f32
    %33 = arith.divf %32, %cst_12 : f32
    %c0_13 = arith.constant 0 : index
    %c0_14 = arith.constant 0 : index
    %34 = memref.load %arg4[%c0_13, %c0_14] : memref<1x1xf32, #tpu.memory_space<smem>>
    memref.store %33, %arg4[%c0_13, %c0_14] : memref<1x1xf32, #tpu.memory_space<smem>>
    return
  }
  func.func @transform_0(%arg0: i32) -> (i32, i32) {
    %c0_i32 = arith.constant 0 : i32
    %c0_i32_0 = arith.constant 0 : i32
    %c0_i32_1 = arith.constant 0 : i32
    return %c0_i32, %c0_i32_0 : i32, i32
  }
  func.func @transform_1(%arg0: i32) -> (i32, i32) {
    %c0_i32 = arith.constant 0 : i32
    %c0_i32_0 = arith.constant 0 : i32
    %c0_i32_1 = arith.constant 0 : i32
    return %c0_i32, %c0_i32_0 : i32, i32
  }
  func.func @transform_2(%arg0: i32) -> (i32, i32) {
    %c0_i32 = arith.constant 0 : i32
    %c0_i32_0 = arith.constant 0 : i32
    %c0_i32_1 = arith.constant 0 : i32
    return %c0_i32, %c0_i32_0 : i32, i32
  }
  func.func @transform_3(%arg0: i32) -> (i32, i32) {
    %c0_i32 = arith.constant 0 : i32
    %c0_i32_0 = arith.constant 0 : i32
    %c0_i32_1 = arith.constant 0 : i32
    return %c0_i32, %c0_i32_0 : i32, i32
  }
}

</mosaic_0001>

<llo_original>
// kernel: tpu_custom_call.1
$region0: #{tpu_custom_call.1}
  #allocation0 [shape = 'u32[]', space=smem, size = 0x4, offset = 0x4, fixed_abs, tag = 'smem constant byte address 0x4 - core index']
  #allocation1 [shape = 'u32[72,128]{1,0:T(1,128)}', space=vmem, size = 0x9000, scoped, tag = 'internal scratch']
  %s0 = inlined_call_operand.hbm [shape: f32[8,256], index: 0, kind: input, shape index: {}]
  %s1 = inlined_call_operand.hbm [shape: f32[8,256], index: 1, kind: input, shape index: {}]
  %s2 = inlined_call_operand.hbm [shape: f32[8,256], index: 2, kind: input, shape index: {}]
  %s3 = inlined_call_operand.hbm [shape: f32[1,1], index: 3, kind: output, shape index: {}]
  %s4 = sld [smem:[#allocation0]]
  $region34: #{tpu_custom_call.1} parent=0
    _
  %s6 = ssub.s32 1, %s4
  %s7 = scalar_select 0, %s6, %s4
  $region1: #{tpu_custom_call.1} parent=0
    #allocation2 [shape = 'u8[8192]{0}', space=vmem, size = 0x2000, scoped, tag = 'input window, operand 0, single buffered']
    #allocation3 [shape = 's32[1]{0}', space=sflag, size = 0x4, scoped, tag = 'scoped memory for tpu_custom_call.1']
    #allocation4 [shape = 's32[1]{0}', space=sflag, size = 0x4, scoped, tag = 'scoped memory for tpu_custom_call.1']
    #allocation5 [shape = 'u8[8192]{0}', space=vmem, size = 0x2000, scoped, tag = 'input window, operand 1, single buffered']
    #allocation6 [shape = 's32[1]{0}', space=sflag, size = 0x4, scoped, tag = 'scoped memory for tpu_custom_call.1']
    #allocation7 [shape = 'u8[8192]{0}', space=vmem, size = 0x2000, scoped, tag = 'input window, operand 2, single buffered']
    #allocation8 [shape = 'u8[512]{0}', space=smem, size = 0x200, scoped, tag = 'output window, operand 0, single buffered']
    %8 = vsyncpa [#allocation3], 0
    %9 = vsyncpa [#allocation6], 0
    %10 = vsyncpa [#allocation4], 0
    // Predicated region
    $region2: #{tpu_custom_call.1} parent=1 // pred_check
      _
    $region3: #{tpu_custom_call.1} parent=1 // pred_check_branch
      %12 = sbr.rel (0) target = $region5
    $region4: #{tpu_custom_call.1} parent=1 // pred_region
      %14 = vsyncadd [#allocation3], 0
      %s16 = sshll.u32 %s0, 4
      %s17 = int_to_ptr.hbm [resolvable:$true] %s16
      %s18 = sshll.u32 [#allocation2], 4
      %s19 = int_to_ptr.vmem [resolvable:$true] %s18
      %21 = dma.hbm_to_vmem [thread:$0]  %s17, 256, %s19, [#allocation3]
    $region5: #{tpu_custom_call.1} parent=1 // pred_fallthru
      _
    // Predicated region
    $region6: #{tpu_custom_call.1} parent=1 // pred_check
      _
    $region7: #{tpu_custom_call.1} parent=1 // pred_check_branch
      %23 = sbr.rel (0) target = $region9
    $region8: #{tpu_custom_call.1} parent=1 // pred_region
      %25 = vsyncadd [#allocation6], 0
      %s27 = sshll.u32 %s1, 4
      %s28 = int_to_ptr.hbm [resolvable:$true] %s27
      %s29 = sshll.u32 [#allocation5], 4
      %s30 = int_to_ptr.vmem [resolvable:$true] %s29
      %32 = dma.hbm_to_vmem [thread:$0]  %s28, 256, %s30, [#allocation6]
    $region9: #{tpu_custom_call.1} parent=1 // pred_fallthru
      _
    // Predicated region
    $region10: #{tpu_custom_call.1} parent=1 // pred_check
      _
    $region11: #{tpu_custom_call.1} parent=1 // pred_check_branch
      %34 = sbr.rel (0) target = $region13
    $region12: #{tpu_custom_call.1} parent=1 // pred_region
      %36 = vsyncadd [#allocation6], 0
      %s38 = sshll.u32 %s2, 4
      %s39 = int_to_ptr.hbm [resolvable:$true] %s38
      %s40 = sshll.u32 [#allocation7], 4
      %s41 = int_to_ptr.vmem [resolvable:$true] %s40
      %43 = dma.hbm_to_vmem [thread:$0]  %s39, 256, %s41, [#allocation6]
    $region13: #{tpu_custom_call.1} parent=1 // pred_fallthru
      _
    // Predicated region
    $region14: #{tpu_custom_call.1} parent=1 // pred_check
      _
    $region15: #{tpu_custom_call.1} parent=1 // pred_check_branch
      %45 = sbr.rel (0) target = $region17
    $region16: #{tpu_custom_call.1} parent=1 // pred_region
      %47 = dma.done [#allocation3], 256
    $region17: #{tpu_custom_call.1} parent=1 // pred_fallthru
      _
    // Predicated region
    $region18: #{tpu_custom_call.1} parent=1 // pred_check
      _
    $region19: #{tpu_custom_call.1} parent=1 // pred_check_branch
      %49 = sbr.rel (0) target = $region21
    $region20: #{tpu_custom_call.1} parent=1 // pred_region
      %51 = dma.done [#allocation6], 256
    $region21: #{tpu_custom_call.1} parent=1 // pred_fallthru
      _
    // Predicated region
    $region22: #{tpu_custom_call.1} parent=1 // pred_check
      _
    $region23: #{tpu_custom_call.1} parent=1 // pred_check_branch
      %53 = sbr.rel (0) target = $region25
    $region24: #{tpu_custom_call.1} parent=1 // pred_region
      %55 = dma.done [#allocation6], 256
    $region25: #{tpu_custom_call.1} parent=1 // pred_fallthru
      _
    %v56 = vld [vmem:[#allocation2] sm:$0xff]
    %v57 = vld [vmem:[#allocation2 + $0x8] sm:$0xff]
    %v58 = vld [vmem:[#allocation5] sm:$0xff]
    %v59 = vld [vmem:[#allocation5 + $0x8] sm:$0xff]
    %v60 = vld [vmem:[#allocation7] sm:$0xff]
    %v61 = vld [vmem:[#allocation7 + $0x8] sm:$0xff]
    %v62 = vand.u32 2147483647, %v56
    %v63 = vand.u32 2147483647, %v57
    %v64 = vsub.f32 0.0, %v62
    %v65 = vsub.f32 0.0, %v63
    %v66 = vmul.f32 %v64, 1.442695
    %v67 = vpow.pop %v66
    %v68 = vmul.f32 %v65, 1.442695
    %v69 = vpow.pop %v68
    %v70 = vadd.f32 %v67, 1.0
    %v71 = vadd.f32 %v69, 1.0
    %vm72 = vcmp.ge.f32.partialorder %v56, 0.0
    %vm73 = vcmp.ge.f32.partialorder %v57, 0.0
    %v74 = vsel %vm72, 1.0, %v67
    %v75 = vsel %vm73, 1.0, %v69
    %v76 = vrcp.pop %v70
    %v77 = vmul.f32 %v70, %v76
    %v78 = vsub.f32 1.0, %v77
    %v79 = vmul.f32 %v76, %v78
    %v80 = vadd.f32 %v76, %v79
    %vm81 = vweird.f32 %v70
    %vm82 = vweird.f32 %v76
    %vm83 = vmor %vm81, %vm82
    %v84 = vsel %vm83, %v76, %v80
    %v85 = vand.u32 2147483647, %v70
    %vm86 = vcmp.eq.f32.partialorder %v85, 8.507059e+37
    %v87 = vand.u32 %v70, 2147483648
    %v88 = vor.u32 1.1754944e-38, %v87
    %v89 = vsel %vm86, %v88, %v84
    %v90 = vmul.f32 %v74, %v89
    %v91 = vrcp.pop %v71
    %v92 = vmul.f32 %v71, %v91
    %v93 = vsub.f32 1.0, %v92
    %v94 = vmul.f32 %v91, %v93
    %v95 = vadd.f32 %v91, %v94
    %vm96 = vweird.f32 %v71
    %vm97 = vweird.f32 %v91
    %vm98 = vmor %vm96, %vm97
    %v99 = vsel %vm98, %v91, %v95
    %v100 = vand.u32 2147483647, %v71
    %vm101 = vcmp.eq.f32.partialorder %v100, 8.507059e+37
    %v102 = vand.u32 %v71, 2147483648
    %v103 = vor.u32 1.1754944e-38, %v102
    %v104 = vsel %vm101, %v103, %v99
    %v105 = vmul.f32 %v75, %v104
    %v106 = vmul.f32 %v90, %v90
    %v107 = vmul.f32 %v105, %v105
    %v108 = vmul.f32 %v106, 0.75
    %v109 = vmul.f32 %v107, 0.75
    %v110 = vsub.f32 1.0, %v60
    %v111 = vsub.f32 1.0, %v61
    %v112 = vmul.f32 %v108, %v110
    %v113 = vmul.f32 %v109, %v111
    %v114 = vmul.f32 %v58, %v60
    %v115 = vmul.f32 %v59, %v61
    %v116 = vadd.f32 %v112, %v114
    %v117 = vadd.f32 %v113, %v115
    %v118 = vmax.f32 %v56, 0.0
    %v119 = vmax.f32 %v57, 0.0
    %v120 = vmul.f32 %v56, %v58
    %v121 = vmul.f32 %v57, %v59
    %v122 = vsub.f32 %v118, %v120
    %v123 = vsub.f32 %v119, %v121
    %v124 = vadd.f32 %v67, 1.0
    %v125 = vlog2.pop %v124
    %v126 = vmul.f32 %v125, 0.6931472
    %v127 = vmul.f32 -0.5, %v67
    %v128 = vadd.f32 %v127, 1.0
    %v129 = vmul.f32 %v128, %v67
    %v130 = vand.u32 2147483647, %v67
    %vm131 = vcmp.lt.f32.partialorder %v130, 0.0004427343
    %v132 = vsel %vm131, %v129, %v126
    %v133 = vadd.f32 %v69, 1.0
    %v134 = vlog2.pop %v133
    %v135 = vmul.f32 %v134, 0.6931472
    %v136 = vmul.f32 -0.5, %v69
    %v137 = vadd.f32 %v136, 1.0
    %v138 = vmul.f32 %v137, %v69
    %v139 = vand.u32 2147483647, %v69
    %vm140 = vcmp.lt.f32.partialorder %v139, 0.0004427343
    %v141 = vsel %vm140, %v138, %v135
    %v142 = vadd.f32 %v122, %v132
    %v143 = vadd.f32 %v123, %v141
    %v144 = vmul.f32 %v142, %v116
    %v145 = vmul.f32 %v143, %v117
    %v146 = vadd.f32 %v144, %v145
    %147 = vadd.xlane.f32.xlu0 %v146
    %v148 = vpop.xlane.xlu0 %147
    %v149 = vrot.slane %v148, 4
    %v150 = vadd.f32 %v148, %v149
    %v151 = vrot.slane %v150, 2
    %v152 = vadd.f32 %v150, %v151
    %v153 = vrot.slane %v152, 1
    %v154 = vadd.f32 %v152, %v153
    %s155 = vtos %v154
    %v156 = vrcp.pop 256.0
    %v157 = vmul.f32 256.0, %v156
    %v158 = vsub.f32 1.0, %v157
    %v159 = vmul.f32 %v156, %v158
    %v160 = vadd.f32 %v156, %v159
    %vm161 = vweird.f32 %v156
    %v162 = vsel %vm161, %v156, %v160
    %s163 = vtos %v162
    %s164 = smul.f32 %s155, %s163
    %s165 = scalar_lea.smem [#allocation8], 0
    %166 = sst [smem:[%s165]] %s164
    // Predicated region
    $region26: #{tpu_custom_call.1} parent=1 // pred_check
      _
    $region27: #{tpu_custom_call.1} parent=1 // pred_check_branch
      %168 = sbr.rel (0) target = $region29
    $region28: #{tpu_custom_call.1} parent=1 // pred_region
      %170 = vsyncadd [#allocation4], 0
      %s172 = sshll.u32 %s3, 4
      %s173 = int_to_ptr.hbm [resolvable:$true] %s172
      %175 = dma.smem_to_hbm [#allocation8], 16, %s173, [#allocation4]
    $region29: #{tpu_custom_call.1} parent=1 // pred_fallthru
      _
    // Predicated region
    $region30: #{tpu_custom_call.1} parent=1 // pred_check
      _
    $region31: #{tpu_custom_call.1} parent=1 // pred_check_branch
      %177 = sbr.rel (0) target = $region33
    $region32: #{tpu_custom_call.1} parent=1 // pred_region
      %179 = dma.done [#allocation4], 16
    $region33: #{tpu_custom_call.1} parent=1 // pred_fallthru
      _
    %180 = sfence
    %181 = vsyncpa [#allocation3], 1
    %182 = vsyncpa [#allocation6], 1
    %183 = vsyncpa [#allocation4], 1

</llo_original>
